<compile_context>
chip_gen: v5e
topology: v5e:2x2
jax: 0.10.0
libtpu: 0.0.40
codegen_flags: <defaults>
</compile_context>

<pallas_src>
import numpy as np
import jax
import jax.numpy as jnp
from jax.experimental import pallas as pl
from jax.experimental.pallas import tpu as pltpu

# ----------------------------- small-shape config ----------------------------
BATCH = 1            # MetricModel's patch extractor squeezes dim 0 -> batch=1
CH = 3
IMG = 16
M = IMG * IMG        # pixels per channel (lane axis, 2 x 128)
PATCH = 8            # analog of the 224 crop
STRIDE = PATCH // 2  # analog of the 112 stride
HIDDEN = 32          # synthetic stand-in width for the resnet50 backbone
DIFFUSION_STEPS = 1000
NUM_T_STEPS = 2
REVERSE_SEED = 0
SSIGMA = 0.12
T_TOTAL = 100        # kept for parity with the reference; unused here

_B0 = 21.749107360839844
_DIAP = 77.75585174560547 - 21.749107360839844


# ------------------------------ diffusion schedule ---------------------------
class Schedule:
    def __init__(self, n=DIFFUSION_STEPS):
        scale = 1000.0 / n
        betas = np.linspace(scale * 1e-4, scale * 2e-2, n, dtype=np.float64)
        alphas = 1.0 - betas
        acp = np.cumprod(alphas)
        acp_prev = np.append(1.0, acp[:-1])
        self.betas = betas
        self.alphas_cumprod = acp
        self.sqrt_recip_alphas_cumprod = np.sqrt(1.0 / acp)
        self.sqrt_recipm1_alphas_cumprod = np.sqrt(1.0 / acp - 1.0)
        post_var = betas * (1.0 - acp_prev) / (1.0 - acp)
        self.posterior_log_variance_clipped = np.log(
            np.append(post_var[1], post_var[1:]))
        self.posterior_mean_coef1 = betas * np.sqrt(acp_prev) / (1.0 - acp)
        self.posterior_mean_coef2 = (1.0 - acp_prev) * np.sqrt(alphas) / (1.0 - acp)


# -------------------------------- fused kernel --------------------------------
def _make_fused_kernel(scale, step_coefs):
    """Builds the fused forward kernel.

    scale      : GuidedDiffusion scale (python float, baked in).
    step_coefs : per-step (sqrt_recip_acp, sqrt_recipm1_acp, post_coef1,
                 post_coef2, posterior_log_var_clipped, log_beta, add_noise)
                 python constants, unrolled at trace time.

    Kernel refs:
      x_ref     : VMEM [C, M]        raw input image in [0, 1] (lane-dense)
      wdn_ref   : VMEM [2C, C]       concatenated eps / variance denoiser heads
      bdn_ref   : VMEM [T, 2C, 1]    per-step denoiser biases (time emb folded)
      noise_ref : VMEM [T, C, M]     precomputed standard-normal reverse noise
      w1_ref    : VMEM [HIDDEN, C]   pixel-wise backbone features
      b1_ref    : VMEM [HIDDEN, 1]
      wvec_ref  : VMEM [1, M]        patch-coverage weights (GAP+patch-mean collapsed)
      w2_ref    : VMEM [HIDDEN, 1]   score head
      b2_ref    : SMEM [1] float32   score head bias
      o_ref     : VMEM [1, 1]        scalar quality score
    """
    def kernel(x_ref, wdn_ref, bdn_ref, noise_ref, w1_ref, b1_ref, wvec_ref,
               w2_ref, b2_ref, o_ref):
        # forward(): (x - 0.5) * 2 ; GuidedDiffusion: x0 = scale * img
        x = (x_ref[...] - 0.5) * (2.0 * scale)                  # [C, M]
        wdn = wdn_ref[...]                                      # [2C, C]

        # -------- num_t_steps reverse DDPM p_sample steps (unrolled) --------
        for i, (sr, srm1, c1, c2, min_log, max_log, add_noise) in enumerate(step_coefs):
            ev = jnp.dot(wdn, x, preferred_element_type=jnp.float32) + bdn_ref[i]
            eps = ev[0:CH, :]                                   # [C, M]
            v = ev[CH:2 * CH, :]                                # [C, M]
            # clip_denoised=True
            pred_x0 = jnp.clip(sr * x - srm1 * eps, -1.0, 1.0)
            mean = c1 * pred_x0 + c2 * x
            if add_noise:                                       # nonzero_mask (t != 0)
                # "learned_range" variance (matching guided-diffusion)
                frac = (v + 1.0) * 0.5
                log_var = frac * max_log + (1.0 - frac) * min_log
                x = mean + jnp.exp(0.5 * log_var) * noise_ref[i]
            else:
                x = mean

        # -------- MetricClassifier: classifier((x_re + 1) * 0.5) --------
        img = (x + 1.0) * 0.5                                   # [C, M]
        h = jnp.dot(w1_ref[...], img, preferred_element_type=jnp.float32) + b1_ref[...]
        h = jnp.maximum(h, 0.0)                                 # [HIDDEN, M]
        # per-patch GAP followed by mean over (overlapping) patches, collapsed
        # into one coverage-weighted pixel reduction (exact, backbone is 1x1).
        pooled = jnp.sum(h * wvec_ref[...], axis=1, keepdims=True)      # [HIDDEN, 1]
        o_ref[...] = jnp.sum(pooled * w2_ref[...], keepdims=True) + b2_ref[0]

    return kernel


def _fused_forward_call(kernel, x2d, w_dn, b_dn, noise, w1t, b1c, wvec, w2c, b2):
    return pl.pallas_call(
        kernel,
        out_shape=jax.ShapeDtypeStruct((1, 1), jnp.float32),
        in_specs=[
            pl.BlockSpec(memory_space=pltpu.MemorySpace.VMEM),  # x     [C, M]
            pl.BlockSpec(memory_space=pltpu.MemorySpace.VMEM),  # w_dn  [2C, C]
            pl.BlockSpec(memory_space=pltpu.MemorySpace.VMEM),  # b_dn  [T, 2C, 1]
            pl.BlockSpec(memory_space=pltpu.MemorySpace.VMEM),  # noise [T, C, M]
            pl.BlockSpec(memory_space=pltpu.MemorySpace.VMEM),  # w1t   [HIDDEN, C]
            pl.BlockSpec(memory_space=pltpu.MemorySpace.VMEM),  # b1c   [HIDDEN, 1]
            pl.BlockSpec(memory_space=pltpu.MemorySpace.VMEM),  # wvec  [1, M]
            pl.BlockSpec(memory_space=pltpu.MemorySpace.VMEM),  # w2c   [HIDDEN, 1]
            pl.BlockSpec(memory_space=pltpu.MemorySpace.SMEM),  # b2    (1,) f32
        ],
        out_specs=pl.BlockSpec(memory_space=pltpu.MemorySpace.VMEM),
    )(x2d, w_dn, b_dn, noise, w1t, b1c, wvec, w2c, b2)


# --------------------------------- wrapper ------------------------------------
class DensePureCertify:
    def __init__(self):
        self.sched = Schedule()

        # --- GuidedDiffusion.__init__ scalar setup ---
        sigma = SSIGMA
        a = 1.0 / (1.0 + (sigma * 2.0) ** 2)
        self.scale = float(a ** 0.5)
        sig2 = sigma * 2.0
        sq = self.sched.sqrt_recipm1_alphas_cumprod
        self.t = len(self.sched.alphas_cumprod) - 1
        for t in range(len(sq) - 1):
            if sq[t] < sig2 and sq[t + 1] >= sig2:
                self.t = t + 1 if (sig2 - sq[t] > sq[t + 1] - sig2) else t
                break

        # --- deterministic synthetic parameters (lane-dense orientation) ---
        k = jax.random.PRNGKey(42)
        k1, k2, k3, k4 = jax.random.split(k, 4)
        w_eps = 0.1 * jax.random.normal(k1, (CH, CH), dtype=jnp.float32)
        w_var = 0.1 * jax.random.normal(k2, (CH, CH), dtype=jnp.float32)
        self.w_dn = jnp.concatenate([w_eps.T, w_var.T], axis=0)        # [2C, C]
        w1 = 0.1 * jax.random.normal(k3, (CH, HIDDEN), dtype=jnp.float32)
        self.w1t = jnp.asarray(w1.T)                                    # [HIDDEN, C]
        self.b1c = jnp.zeros((HIDDEN, 1), dtype=jnp.float32)
        self.w2c = 0.1 * jax.random.normal(k4, (HIDDEN, 1), dtype=jnp.float32)
        self.b2 = jnp.zeros((1,), dtype=jnp.float32)

        # --- per-step schedule scalars + synthetic time-embedding biases ---
        inter = self.t / NUM_T_STEPS
        self.indices_t_steps = [round(self.t - i * inter) for i in range(NUM_T_STEPS)]
        s = self.sched
        step_coefs = []
        bdn = []
        for i, real_t in enumerate(self.indices_t_steps):
            real_t = int(real_t)
            t_small = NUM_T_STEPS - 1 - i
            step_coefs.append((
                float(s.sqrt_recip_alphas_cumprod[real_t]),
                float(s.sqrt_recipm1_alphas_cumprod[real_t]),
                float(s.posterior_mean_coef1[real_t]),
                float(s.posterior_mean_coef2[real_t]),
                float(s.posterior_log_variance_clipped[real_t]),
                float(np.log(s.betas[real_t])),
                t_small != 0,
            ))
            temb = self._time_bias(real_t)                              # [C, 1]
            bdn.append(jnp.concatenate([temb, temb], axis=0))           # eps|var biases
        self.b_dn = jnp.stack(bdn, axis=0)                              # [T, 2C, 1]

        # --- patch coverage weights: (per-patch GAP ∘ mean over patches) ---
        h_idx = [i * STRIDE for i in range((IMG - PATCH) // STRIDE + 1)]
        if h_idx[-1] != IMG - PATCH:
            h_idx.append(IMG - PATCH)
        w_idx = list(h_idx)
        cov = np.zeros((IMG, IMG), dtype=np.float32)
        for h0 in h_idx:
            for w0 in w_idx:
                cov[h0:h0 + PATCH, w0:w0 + PATCH] += 1.0
        n_patches = len(h_idx) * len(w_idx)
        self.wvec = jnp.asarray(
            (cov / (n_patches * PATCH * PATCH)).reshape(1, M))          # [1, M]

        self._kernel = _make_fused_kernel(self.scale, step_coefs)
        self._forward_jit = jax.jit(self._forward_impl)

        self._reverse_base_key = jax.random.PRNGKey(REVERSE_SEED)
        self.counter = 0
        self.tag = None

    @staticmethod
    def _time_bias(real_t):
        # deterministic synthetic timestep embedding folded into the denoiser bias
        phase = real_t / float(DIFFUSION_STEPS)
        idx = np.arange(CH, dtype=np.float32) + 1.0
        return jnp.asarray((0.05 * np.sin(phase * idx)).reshape(CH, 1))

    # ---- whole forward = 1 pallas_call + scalar glue (jitted) -----------------
    def _forward_impl(self, x, key, w_dn, b_dn, w1t, b1c, wvec, w2c, b2):
        x2d = x.reshape(BATCH * CH, M)          # NCHW (B=1) -> [C, H*W], lane-dense
        # reverse-process Gaussian noise (tiny: T x C x M floats)
        noise = jax.random.normal(key, (NUM_T_STEPS, CH, M), dtype=jnp.float32)
        score = _fused_forward_call(self._kernel, x2d, w_dn, b_dn, noise,
                                    w1t, b1c, wvec, w2c, b2)[0, 0]
        # MetricClassifier bin discretisation
        d = _DIAP / 10.0
        cur = jnp.where(
            score <= _B0, 0,
            jnp.where(score > _B0 + 10.0 * d, 11,
                      jnp.ceil((score - _B0) / d).astype(jnp.int32)))
        return cur.astype(jnp.int32).reshape(1)

    # ---- DensePure_Certify.forward --------------------------------------------
    def forward(self, x, sample_id):
        counter = self.counter
        if counter % 5 == 0:
            print(f'diffusion times: {counter}')
        # counter-advanced key emulates the persisting reverse RNG state
        key = jax.random.fold_in(self._reverse_base_key, counter)
        out = self._forward_jit(x, key, self.w_dn, self.b_dn, self.w1t,
                                self.b1c, self.wvec, self.w2c, self.b2)
        self.counter += 1
        return out


# ----------------------------------- main --------------------------------------
if __name__ == "__main__":
    key = jax.random.PRNGKey(0)
    x = jax.random.uniform(key, (BATCH, CH, IMG, IMG), dtype=jnp.float32)  # NCHW in [0,1]

    model = DensePureCertify()
    out = model.forward(x, sample_id=0)
    jax.block_until_ready(out)
    print("KERNEL_OK")
</pallas_src>

<mosaic_0001>
module attributes {stable_mosaic.version = 11 : i64} {
  func.func @kernel(%arg0: memref<3x256xf32, #tpu.memory_space<vmem>>, %arg1: memref<6x3xf32, #tpu.memory_space<vmem>>, %arg2: memref<2x6x1xf32, #tpu.memory_space<vmem>>, %arg3: memref<2x3x256xf32, #tpu.memory_space<vmem>>, %arg4: memref<32x3xf32, #tpu.memory_space<vmem>>, %arg5: memref<32x1xf32, #tpu.memory_space<vmem>>, %arg6: memref<1x256xf32, #tpu.memory_space<vmem>>, %arg7: memref<32x1xf32, #tpu.memory_space<vmem>>, %arg8: memref<1xf32, #tpu.memory_space<smem>>, %arg9: memref<1x1xf32, #tpu.memory_space<vmem>>) attributes {dimension_semantics = [], scalar_prefetch = 0 : i64, scratch_operands = 0 : i64, tpu.core_type = #tpu.core_type<tc>} {
    %c0 = arith.constant 0 : index
    %c0_0 = arith.constant 0 : index
    %0 = vector.load %arg0[%c0, %c0_0] : memref<3x256xf32, #tpu.memory_space<vmem>>, vector<3x256xf32>
    %cst = arith.constant 5.000000e-01 : f32
    %1 = vector.broadcast %cst : f32 to vector<3x256xf32>
    %2 = arith.subf %0, %1 : vector<3x256xf32>
    %cst_1 = arith.constant 1.94477463 : f32
    %3 = vector.broadcast %cst_1 : f32 to vector<3x256xf32>
    %4 = arith.mulf %2, %3 : vector<3x256xf32>
    %c0_2 = arith.constant 0 : index
    %c0_3 = arith.constant 0 : index
    %5 = vector.load %arg1[%c0_2, %c0_3] : memref<6x3xf32, #tpu.memory_space<vmem>>, vector<6x3xf32>
    %cst_4 = arith.constant dense<0.000000e+00> : vector<6x256xf32>
    %6 = tpu.matmul %5, %4, %cst_4 {dimension_numbers = #tpu.dot_dimension_numbers<[1], [0], [0], [1], [0, 0, 1, 1], [], []>} : vector<6x3xf32>, vector<3x256xf32>, vector<6x256xf32> -> vector<6x256xf32>
    %c0_5 = arith.constant 0 : index
    %c0_6 = arith.constant 0 : index
    %c0_7 = arith.constant 0 : index
    %7 = vector.load %arg2[%c0_5, %c0_6, %c0_7] : memref<2x6x1xf32, #tpu.memory_space<vmem>>, vector<1x6x1xf32>
    %8 = vector.shape_cast %7 : vector<1x6x1xf32> to vector<6x1xf32>
    %9 = vector.broadcast %8 : vector<6x1xf32> to vector<6x256xf32>
    %10 = arith.addf %6, %9 : vector<6x256xf32>
    %11 = vector.extract_strided_slice %10 {offsets = [0, 0], sizes = [3, 256], strides = [1, 1]} : vector<6x256xf32> to vector<3x256xf32>
    %12 = vector.extract_strided_slice %10 {offsets = [3, 0], sizes = [3, 256], strides = [1, 1]} : vector<6x256xf32> to vector<3x256xf32>
    %cst_8 = arith.constant 1.02871943 : f32
    %13 = vector.broadcast %cst_8 : f32 to vector<3x256xf32>
    %14 = arith.mulf %13, %4 : vector<3x256xf32>
    %cst_9 = arith.constant 0.24137865 : f32
    %15 = vector.broadcast %cst_9 : f32 to vector<3x256xf32>
    %16 = arith.mulf %15, %11 : vector<3x256xf32>
    %17 = arith.subf %14, %16 : vector<3x256xf32>
    %cst_10 = arith.constant -1.000000e+00 : f32
    %cst_11 = arith.constant 1.000000e+00 : f32
    %18 = vector.broadcast %cst_10 : f32 to vector<3x256xf32>
    %19 = arith.maximumf %18, %17 : vector<3x256xf32>
    %20 = vector.broadcast %cst_11 : f32 to vector<3x256xf32>
    %21 = arith.minimumf %20, %19 : vector<3x256xf32>
    %cst_12 = arith.constant 0.0264051855 : f32
    %22 = vector.broadcast %cst_12 : f32 to vector<3x256xf32>
    %23 = arith.mulf %22, %21 : vector<3x256xf32>
    %cst_13 = arith.constant 0.973584532 : f32
    %24 = vector.broadcast %cst_13 : f32 to vector<3x256xf32>
    %25 = arith.mulf %24, %4 : vector<3x256xf32>
    %26 = arith.addf %23, %25 : vector<3x256xf32>
    %cst_14 = arith.constant 1.000000e+00 : f32
    %27 = vector.broadcast %cst_14 : f32 to vector<3x256xf32>
    %28 = arith.addf %12, %27 : vector<3x256xf32>
    %cst_15 = arith.constant 5.000000e-01 : f32
    %29 = vector.broadcast %cst_15 : f32 to vector<3x256xf32>
    %30 = arith.mulf %28, %29 : vector<3x256xf32>
    %cst_16 = arith.constant -6.50603437 : f32
    %31 = vector.broadcast %cst_16 : f32 to vector<3x256xf32>
    %32 = arith.mulf %30, %31 : vector<3x256xf32>
    %cst_17 = arith.constant 1.000000e+00 : f32
    %33 = vector.broadcast %cst_17 : f32 to vector<3x256xf32>
    %34 = arith.subf %33, %30 : vector<3x256xf32>
    %cst_18 = arith.constant -6.53205729 : f32
    %35 = vector.broadcast %cst_18 : f32 to vector<3x256xf32>
    %36 = arith.mulf %34, %35 : vector<3x256xf32>
    %37 = arith.addf %32, %36 : vector<3x256xf32>
    %cst_19 = arith.constant 5.000000e-01 : f32
    %38 = vector.broadcast %cst_19 : f32 to vector<3x256xf32>
    %39 = arith.mulf %38, %37 : vector<3x256xf32>
    %40 = math.exp %39 : vector<3x256xf32>
    %c0_20 = arith.constant 0 : index
    %c0_21 = arith.constant 0 : index
    %c0_22 = arith.constant 0 : index
    %41 = vector.load %arg3[%c0_20, %c0_21, %c0_22] : memref<2x3x256xf32, #tpu.memory_space<vmem>>, vector<1x3x256xf32>
    %42 = vector.shape_cast %41 : vector<1x3x256xf32> to vector<3x256xf32>
    %43 = arith.mulf %40, %42 : vector<3x256xf32>
    %44 = arith.addf %26, %43 : vector<3x256xf32>
    %cst_23 = arith.constant dense<0.000000e+00> : vector<6x256xf32>
    %45 = tpu.matmul %5, %44, %cst_23 {dimension_numbers = #tpu.dot_dimension_numbers<[1], [0], [0], [1], [0, 0, 1, 1], [], []>} : vector<6x3xf32>, vector<3x256xf32>, vector<6x256xf32> -> vector<6x256xf32>
    %c1 = arith.constant 1 : index
    %c0_24 = arith.constant 0 : index
    %c0_25 = arith.constant 0 : index
    %46 = vector.load %arg2[%c1, %c0_24, %c0_25] : memref<2x6x1xf32, #tpu.memory_space<vmem>>, vector<1x6x1xf32>
    %47 = vector.shape_cast %46 : vector<1x6x1xf32> to vector<6x1xf32>
    %48 = vector.broadcast %47 : vector<6x1xf32> to vector<6x256xf32>
    %49 = arith.addf %45, %48 : vector<6x256xf32>
    %50 = vector.extract_strided_slice %49 {offsets = [0, 0], sizes = [3, 256], strides = [1, 1]} : vector<6x256xf32> to vector<3x256xf32>
    %cst_26 = arith.constant 1.00810969 : f32
    %51 = vector.broadcast %cst_26 : f32 to vector<3x256xf32>
    %52 = arith.mulf %51, %44 : vector<3x256xf32>
    %cst_27 = arith.constant 0.127613187 : f32
    %53 = vector.broadcast %cst_27 : f32 to vector<3x256xf32>
    %54 = arith.mulf %53, %50 : vector<3x256xf32>
    %55 = arith.subf %52, %54 : vector<3x256xf32>
    %cst_28 = arith.constant -1.000000e+00 : f32
    %cst_29 = arith.constant 1.000000e+00 : f32
    %56 = vector.broadcast %cst_28 : f32 to vector<3x256xf32>
    %57 = arith.maximumf %56, %55 : vector<3x256xf32>
    %58 = vector.broadcast %cst_29 : f32 to vector<3x256xf32>
    %59 = arith.minimumf %58, %57 : vector<3x256xf32>
    %cst_30 = arith.constant 0.0493691489 : f32
    %60 = vector.broadcast %cst_30 : f32 to vector<3x256xf32>
    %61 = arith.mulf %60, %59 : vector<3x256xf32>
    %cst_31 = arith.constant 0.950629293 : f32
    %62 = vector.broadcast %cst_31 : f32 to vector<3x256xf32>
    %63 = arith.mulf %62, %44 : vector<3x256xf32>
    %64 = arith.addf %61, %63 : vector<3x256xf32>
    %cst_32 = arith.constant 1.000000e+00 : f32
    %65 = vector.broadcast %cst_32 : f32 to vector<3x256xf32>
    %66 = arith.addf %64, %65 : vector<3x256xf32>
    %cst_33 = arith.constant 5.000000e-01 : f32
    %67 = vector.broadcast %cst_33 : f32 to vector<3x256xf32>
    %68 = arith.mulf %66, %67 : vector<3x256xf32>
    %c0_34 = arith.constant 0 : index
    %c0_35 = arith.constant 0 : index
    %69 = vector.load %arg4[%c0_34, %c0_35] : memref<32x3xf32, #tpu.memory_space<vmem>>, vector<32x3xf32>
    %cst_36 = arith.constant dense<0.000000e+00> : vector<32x256xf32>
    %70 = tpu.matmul %69, %68, %cst_36 {dimension_numbers = #tpu.dot_dimension_numbers<[1], [0], [0], [1], [0, 0, 1, 1], [], []>} : vector<32x3xf32>, vector<3x256xf32>, vector<32x256xf32> -> vector<32x256xf32>
    %c0_37 = arith.constant 0 : index
    %c0_38 = arith.constant 0 : index
    %71 = vector.load %arg5[%c0_37, %c0_38] : memref<32x1xf32, #tpu.memory_space<vmem>>, vector<32x1xf32>
    %72 = vector.broadcast %71 : vector<32x1xf32> to vector<32x256xf32>
    %73 = arith.addf %70, %72 : vector<32x256xf32>
    %cst_39 = arith.constant 0.000000e+00 : f32
    %74 = vector.broadcast %cst_39 : f32 to vector<32x256xf32>
    %75 = arith.maximumf %73, %74 : vector<32x256xf32>
    %c0_40 = arith.constant 0 : index
    %c0_41 = arith.constant 0 : index
    %76 = vector.load %arg6[%c0_40, %c0_41] : memref<1x256xf32, #tpu.memory_space<vmem>>, vector<1x256xf32>
    %77 = vector.broadcast %76 : vector<1x256xf32> to vector<32x256xf32>
    %78 = arith.mulf %75, %77 : vector<32x256xf32>
    %cst_42 = arith.constant dense<0.000000e+00> : vector<32xf32>
    %79 = vector.multi_reduction <add>, %78, %cst_42 [1] : vector<32x256xf32> to vector<32xf32>
    %80 = vector.shape_cast %79 : vector<32xf32> to vector<32x1xf32>
    %c0_43 = arith.constant 0 : index
    %c0_44 = arith.constant 0 : index
    %81 = vector.load %arg7[%c0_43, %c0_44] : memref<32x1xf32, #tpu.memory_space<vmem>>, vector<32x1xf32>
    %82 = arith.mulf %80, %81 : vector<32x1xf32>
    %83 = vector.shape_cast %82 : vector<32x1xf32> to vector<1x32x1xf32>
    %cst_45 = arith.constant dense<0.000000e+00> : vector<1xf32>
    %84 = vector.multi_reduction <add>, %83, %cst_45 [1, 2] : vector<1x32x1xf32> to vector<1xf32>
    %85 = vector.shape_cast %84 : vector<1xf32> to vector<1x1x1xf32>
    %86 = vector.extract %85[0, 0, 0] : f32 from vector<1x1x1xf32>
    %87 = vector.broadcast %86 : f32 to vector<1x1xf32>
    %c0_46 = arith.constant 0 : index
    %88 = memref.load %arg8[%c0_46] : memref<1xf32, #tpu.memory_space<smem>>
    %89 = vector.broadcast %88 : f32 to vector<1x1xf32>
    %90 = arith.addf %87, %89 : vector<1x1xf32>
    %c0_47 = arith.constant 0 : index
    %c0_48 = arith.constant 0 : index
    %91 = vector.load %arg9[%c0_47, %c0_48] : memref<1x1xf32, #tpu.memory_space<vmem>>, vector<1x1xf32>
    tpu.vector_store %arg9[%c0_47, %c0_48], %90 {strides = array<i32>} : memref<1x1xf32, #tpu.memory_space<vmem>>, vector<1x1xf32>,
    return
  }
}

</mosaic_0001>

<llo_original>
// kernel: _forward_impl.1
$region0: #{_forward_impl.1}
  #allocation0 [shape = 'u32[]', space=smem, size = 0x4, offset = 0x4, fixed_abs, tag = 'smem constant byte address 0x4 - core index']
  #allocation1 [shape = 'u32[72,128]{1,0:T(1,128)}', space=vmem, size = 0x9000, scoped, tag = 'internal scratch']
  #allocation2 [shape = 'f32[1]{0:T(128)S(6)}', space=smem, size = 0x200, scoped, tag = 'scoped memory for _forward_impl.1']
  %s0 = inlined_call_operand.vmem [shape: f32[3,256], index: 0, kind: input, shape index: {}]
  %s1 = inlined_call_operand.vmem [shape: f32[6,3], index: 1, kind: input, shape index: {}]
  %s2 = inlined_call_operand.vmem [shape: f32[2,6,1], index: 2, kind: input, shape index: {}]
  %s3 = inlined_call_operand.vmem [shape: f32[2,3,256], index: 3, kind: input, shape index: {}]
  %s4 = inlined_call_operand.vmem [shape: f32[32,3], index: 4, kind: input, shape index: {}]
  %s5 = inlined_call_operand.vmem [shape: f32[32,1], index: 5, kind: input, shape index: {}]
  %s6 = inlined_call_operand.vmem [shape: f32[1,256], index: 6, kind: input, shape index: {}]
  %s7 = inlined_call_operand.vmem [shape: f32[32,1], index: 7, kind: input, shape index: {}]
  %s8 = inlined_call_operand.<no memory space> [shape: f32[1], index: 8, kind: input, shape index: {}]
  %s9 = inlined_call_operand.hbm [shape: f32[1,1], index: 9, kind: output, shape index: {}]
  %s10 = sld [smem:[#allocation0]]
  $region46: #{_forward_impl.1} parent=0
    _
  %s12 = ssub.s32 1, %s10
  %s13 = scalar_select 0, %s12, %s10
  %14 = sst [smem:[#allocation2]] %s8
  $region1: #{_forward_impl.1} parent=0
    #allocation3 [shape = 'u8[512]{0}', space=vmem, size = 0x400, scoped, tag = 'output window, operand 0, single buffered']
    #allocation4 [shape = 's32[1]{0}', space=sflag, size = 0x4, scoped, tag = 'scoped memory for _forward_impl.1']
    %15 = vsyncpa [#allocation4], 0
    // Predicated region
    $region2: #{_forward_impl.1} parent=1 // pred_check
      _
    $region3: #{_forward_impl.1} parent=1 // pred_check_branch
      %17 = sbr.rel (0) target = $region5
    $region4: #{_forward_impl.1} parent=1 // pred_region
      _
    $region5: #{_forward_impl.1} parent=1 // pred_fallthru
      _
    // Predicated region
    $region6: #{_forward_impl.1} parent=1 // pred_check
      _
    $region7: #{_forward_impl.1} parent=1 // pred_check_branch
      %19 = sbr.rel (0) target = $region9
    $region8: #{_forward_impl.1} parent=1 // pred_region
      _
    $region9: #{_forward_impl.1} parent=1 // pred_fallthru
      _
    // Predicated region
    $region10: #{_forward_impl.1} parent=1 // pred_check
      _
    $region11: #{_forward_impl.1} parent=1 // pred_check_branch
      %21 = sbr.rel (0) target = $region13
    $region12: #{_forward_impl.1} parent=1 // pred_region
      _
    $region13: #{_forward_impl.1} parent=1 // pred_fallthru
      _
    // Predicated region
    $region14: #{_forward_impl.1} parent=1 // pred_check
      _
    $region15: #{_forward_impl.1} parent=1 // pred_check_branch
      %23 = sbr.rel (0) target = $region17
    $region16: #{_forward_impl.1} parent=1 // pred_region
      _
    $region17: #{_forward_impl.1} parent=1 // pred_fallthru
      _
    // Predicated region
    $region18: #{_forward_impl.1} parent=1 // pred_check
      _
    $region19: #{_forward_impl.1} parent=1 // pred_check_branch
      %25 = sbr.rel (0) target = $region21
    $region20: #{_forward_impl.1} parent=1 // pred_region
      _
    $region21: #{_forward_impl.1} parent=1 // pred_fallthru
      _
    // Predicated region
    $region22: #{_forward_impl.1} parent=1 // pred_check
      _
    $region23: #{_forward_impl.1} parent=1 // pred_check_branch
      %27 = sbr.rel (0) target = $region25
    $region24: #{_forward_impl.1} parent=1 // pred_region
      _
    $region25: #{_forward_impl.1} parent=1 // pred_fallthru
      _
    // Predicated region
    $region26: #{_forward_impl.1} parent=1 // pred_check
      _
    $region27: #{_forward_impl.1} parent=1 // pred_check_branch
      %29 = sbr.rel (0) target = $region29
    $region28: #{_forward_impl.1} parent=1 // pred_region
      _
    $region29: #{_forward_impl.1} parent=1 // pred_fallthru
      _
    // Predicated region
    $region30: #{_forward_impl.1} parent=1 // pred_check
      _
    $region31: #{_forward_impl.1} parent=1 // pred_check_branch
      %31 = sbr.rel (0) target = $region33
    $region32: #{_forward_impl.1} parent=1 // pred_region
      _
    $region33: #{_forward_impl.1} parent=1 // pred_fallthru
      _
    // Predicated region
    $region34: #{_forward_impl.1} parent=1 // pred_check
      _
    $region35: #{_forward_impl.1} parent=1 // pred_check_branch
      %33 = sbr.rel (0) target = $region37
    $region36: #{_forward_impl.1} parent=1 // pred_region
      _
    $region37: #{_forward_impl.1} parent=1 // pred_fallthru
      _
    %v34 = vld [vmem:[%s0] sm:$0x77]
    %v35 = vsub.f32 %v34, 0.5
    %v36 = vmul.f32 %v35, 1.9447746
    %v37 = vld [vmem:[%s1] sm:$0x3f]
    %v38 = vld [vmem:[%s2] sm:$0x3f]
    %40 = vset.pattern.permute.xlu0 0
    %41 = vperm.xlu0 %40, %v38
    %v42 = vpop.permute.xlu0 %41
    %45 = vst [vmem:[#allocation1] ss:$2 sm:$0xff] %v36
    %v46 = vld.sshfl [vmem:[#allocation1] sm:$0xff pattern:$0x75316420]
    %v47 = vld.sshfl [vmem:[#allocation1 + $0x8] sm:$0xff pattern:$0x75316420]
    %vm48 = vcmask 23552
    %v50 = vsel %vm48, %v37, 0
    %vm52 = vcmask 1042432
    %v53 = vsel %vm52, %v46, 0
    %v55 = vsel %vm52, %v47, 0
    %57 = vmatpush.msra.mxu0 0.0
    %58 = vmatpush.msra.mxu0 0.0
    %59 = vmatpush.msra.mxu0 0.0
    %60 = vmatpush.msra.mxu0 0.0
    %61 = vmatpush.msra.mxu0 0.0
    %62 = vmatpush.msra.mxu0 0.0
    %63 = vmatpush.msra.mxu0 0.0
    %64 = vmatpush.msra.mxu0 0.0
    %65 = vmatpush.msra.mxu0 0.0
    %66 = vmatpush.msra.mxu0 0.0
    %67 = vmatpush.msra.mxu0 0.0
    %68 = vmatpush.msra.mxu0 0.0
    %69 = vmatpush.msra.mxu0 0.0
    %70 = vmatpush.msra.mxu0 0.0
    %71 = vmatpush.msra.mxu0 0.0
    %72 = vmatpush.msra.mxu0 %v53
    %73 = vmatmul.f32.gmra.mxu0 %v50
    %v74 = vpop.f32.mrf.mxu0
    %v75 = vadd.f32 %v42, %v74
    %76 = vdwg.mxu0
    %77 = vmatpush.msra.mxu0 0.0
    %78 = vmatpush.msra.mxu0 0.0
    %79 = vmatpush.msra.mxu0 0.0
    %80 = vmatpush.msra.mxu0 0.0
    %81 = vmatpush.msra.mxu0 0.0
    %82 = vmatpush.msra.mxu0 0.0
    %83 = vmatpush.msra.mxu0 0.0
    %84 = vmatpush.msra.mxu0 0.0
    %85 = vmatpush.msra.mxu0 0.0
    %86 = vmatpush.msra.mxu0 0.0
    %87 = vmatpush.msra.mxu0 0.0
    %88 = vmatpush.msra.mxu0 0.0
    %89 = vmatpush.msra.mxu0 0.0
    %90 = vmatpush.msra.mxu0 0.0
    %91 = vmatpush.msra.mxu0 0.0
    %92 = vmatpush.msra.mxu0 %v55
    %93 = vmatmul.f32.gmra.mxu0 %v50
    %v94 = vpop.f32.mrf.mxu0
    %v95 = vadd.f32 %v42, %v94
    %96 = vdwg.mxu0
    %v97 = vmul.f32 %v36, 1.0287194
    %v98 = vmul.f32 %v75, 0.24137865
    %v99 = vmul.f32 %v95, 0.24137865
    %v102 = vrot.slane %v99, 4
    %vm103 = vcmask 1043456
    %v104 = vsel %vm103, %v98, %v102
    %v106 = vsub.f32 %v97, %v104
    %v107 = vmax.f32 %v106, -1.0
    %v108 = vmin.f32 %v107, 1.0
    %v109 = vmul.f32 %v108, 0.026405185
    %v110 = vmul.f32 %v36, 0.97358453
    %v111 = vadd.f32 %v109, %v110
    %v112 = vadd.f32 %v75, 1.0
    %v113 = vadd.f32 %v95, 1.0
    %v114 = vmul.f32 %v112, 0.5
    %v115 = vmul.f32 %v113, 0.5
    %v116 = vmul.f32 %v114, -6.5060344
    %v117 = vmul.f32 %v115, -6.5060344
    %v118 = vsub.f32 1.0, %v114
    %v119 = vsub.f32 1.0, %v115
    %v120 = vmul.f32 %v118, -6.5320573
    %v121 = vmul.f32 %v119, -6.5320573
    %v122 = vadd.f32 %v116, %v120
    %v123 = vadd.f32 %v117, %v121
    %v124 = vmul.f32 %v122, 0.5
    %v125 = vmul.f32 %v123, 0.5
    %v126 = vmul.f32 %v124, 1.442695
    %v127 = vpow.pop %v126
    %v128 = vmul.f32 %v125, 1.442695
    %v129 = vpow.pop %v128
    %v130 = vld [vmem:[%s3] sm:$0x77]
    %132 = vst [vmem:[#allocation1] ss:$2 sm:$0xff] %v130
    %v133 = vld.sshfl [vmem:[#allocation1] sm:$0xff pattern:$0x75316420]
    %v134 = vld.sshfl [vmem:[#allocation1 + $0x8] sm:$0xff pattern:$0x75316420]
    %v135 = vrot.slane %v133, 5
    %v136 = vrot.slane %v134, 5
    %v139 = vmul.f32 %v127, %v135
    %v140 = vmul.f32 %v129, %v136
    %v143 = vrot.slane %v140, 4
    %v144 = vsel %vm103, %v139, %v143
    %v145 = vsel %vm103, %v143, %v139
    %v146 = vrot.slane %v145, 4
    %vm147 = vcmask 1040384
    %vm148 = vcmask 1044484
    %vm149 = vmor %vm147, %vm148
    %v150 = vrot.slane %v144, 7
    %v151 = vrot.slane %v150, 4
    %v152 = vrot.slane %v146, 7
    %v153 = vsel %vm149, %v151, %v152
    %v155 = vadd.f32 %v111, %v153
    %s156 = scalar_lea.vmem %s2, 8
    %v157 = vld [vmem:[%s156] sm:$0x3f]
    %159 = vset.pattern.permute.xlu0 0
    %160 = vperm.xlu0 %159, %v157
    %v161 = vpop.permute.xlu0 %160
    %164 = vst [vmem:[#allocation1] ss:$2 sm:$0xff] %v155
    %v165 = vld.sshfl [vmem:[#allocation1] sm:$0xff pattern:$0x75316420]
    %v166 = vld.sshfl [vmem:[#allocation1 + $0x8] sm:$0xff pattern:$0x75316420]
    %v167 = vsel %vm52, %v165, 0
    %v169 = vsel %vm52, %v166, 0
    %171 = vmatpush.msra.mxu0 0.0
    %172 = vmatpush.msra.mxu0 0.0
    %173 = vmatpush.msra.mxu0 0.0
    %174 = vmatpush.msra.mxu0 0.0
    %175 = vmatpush.msra.mxu0 0.0
    %176 = vmatpush.msra.mxu0 0.0
    %177 = vmatpush.msra.mxu0 0.0
    %178 = vmatpush.msra.mxu0 0.0
    %179 = vmatpush.msra.mxu0 0.0
    %180 = vmatpush.msra.mxu0 0.0
    %181 = vmatpush.msra.mxu0 0.0
    %182 = vmatpush.msra.mxu0 0.0
    %183 = vmatpush.msra.mxu0 0.0
    %184 = vmatpush.msra.mxu0 0.0
    %185 = vmatpush.msra.mxu0 0.0
    %186 = vmatpush.msra.mxu0 %v167
    %187 = vmatmul.f32.gmra.mxu0 %v50
    %v188 = vpop.f32.mrf.mxu0
    %v189 = vadd.f32 %v161, %v188
    %190 = vdwg.mxu0
    %191 = vmatpush.msra.mxu0 0.0
    %192 = vmatpush.msra.mxu0 0.0
    %193 = vmatpush.msra.mxu0 0.0
    %194 = vmatpush.msra.mxu0 0.0
    %195 = vmatpush.msra.mxu0 0.0
    %196 = vmatpush.msra.mxu0 0.0
    %197 = vmatpush.msra.mxu0 0.0
    %198 = vmatpush.msra.mxu0 0.0
    %199 = vmatpush.msra.mxu0 0.0
    %200 = vmatpush.msra.mxu0 0.0
    %201 = vmatpush.msra.mxu0 0.0
    %202 = vmatpush.msra.mxu0 0.0
    %203 = vmatpush.msra.mxu0 0.0
    %204 = vmatpush.msra.mxu0 0.0
    %205 = vmatpush.msra.mxu0 0.0
    %206 = vmatpush.msra.mxu0 %v169
    %207 = vmatmul.f32.gmra.mxu0 %v50
    %v208 = vpop.f32.mrf.mxu0
    %v209 = vadd.f32 %v161, %v208
    %210 = vdwg.mxu0
    %v211 = vmul.f32 %v155, 1.0081097
    %v212 = vmul.f32 %v189, 0.12761319
    %v213 = vmul.f32 %v209, 0.12761319
    %v216 = vrot.slane %v213, 4
    %v217 = vsel %vm103, %v212, %v216
    %v219 = vsub.f32 %v211, %v217
    %v220 = vmax.f32 %v219, -1.0
    %v221 = vmin.f32 %v220, 1.0
    %v222 = vmul.f32 %v221, 0.04936915
    %v223 = vmul.f32 %v155, 0.9506293
    %v224 = vadd.f32 %v222, %v223
    %v225 = vadd.f32 %v224, 1.0
    %v226 = vmul.f32 %v225, 0.5
    %v227 = vld [vmem:[%s4] sm:$0xff]
    %v228 = vld [vmem:[%s4 + $0x8] sm:$0xff]
    %v229 = vld [vmem:[%s4 + $0x10] sm:$0xff]
    %v230 = vld [vmem:[%s4 + $0x18] sm:$0xff]
    %v231 = vld [vmem:[%s5] sm:$0xff]
    %v232 = vld [vmem:[%s5 + $0x8] sm:$0xff]
    %v233 = vld [vmem:[%s5 + $0x10] sm:$0xff]
    %v234 = vld [vmem:[%s5 + $0x18] sm:$0xff]
    %236 = vset.pattern.permute.xlu0 0
    %237 = vperm.xlu0 %236, %v231
    %v238 = vpop.permute.xlu0 %237
    %241 = vset.pattern.permute.xlu0 0
    %242 = vperm.xlu0 %241, %v232
    %v243 = vpop.permute.xlu0 %242
    %246 = vset.pattern.permute.xlu0 0
    %247 = vperm.xlu0 %246, %v233
    %v248 = vpop.permute.xlu0 %247
    %251 = vset.pattern.permute.xlu0 0
    %252 = vperm.xlu0 %251, %v234
    %v253 = vpop.permute.xlu0 %252
    %256 = vst [vmem:[#allocation1] ss:$2 sm:$0xff] %v226
    %v257 = vld.sshfl [vmem:[#allocation1] sm:$0xff pattern:$0x75316420]
    %v258 = vld.sshfl [vmem:[#allocation1 + $0x8] sm:$0xff pattern:$0x75316420]
    %v260 = vsel %vm48, %v227, 0
    %v263 = vsel %vm48, %v228, 0
    %v266 = vsel %vm48, %v229, 0
    %v269 = vsel %vm48, %v230, 0
    %v271 = vsel %vm52, %v257, 0
    %v273 = vsel %vm52, %v258, 0
    %275 = vmatpush.msra.mxu0 0.0
    %276 = vmatpush.msra.mxu0 0.0
    %277 = vmatpush.msra.mxu0 0.0
    %278 = vmatpush.msra.mxu0 0.0
    %279 = vmatpush.msra.mxu0 0.0
    %280 = vmatpush.msra.mxu0 0.0
    %281 = vmatpush.msra.mxu0 0.0
    %282 = vmatpush.msra.mxu0 0.0
    %283 = vmatpush.msra.mxu0 0.0
    %284 = vmatpush.msra.mxu0 0.0
    %285 = vmatpush.msra.mxu0 0.0
    %286 = vmatpush.msra.mxu0 0.0
    %287 = vmatpush.msra.mxu0 0.0
    %288 = vmatpush.msra.mxu0 0.0
    %289 = vmatpush.msra.mxu0 0.0
    %290 = vmatpush.msra.mxu0 %v271
    %291 = vmatmul.f32.gmra.mxu0 %v260
    %v292 = vpop.f32.mrf.mxu0
    %v293 = vadd.f32 %v238, %v292
    %294 = vmatmul.f32.gmra.mxu0 %v263
    %v295 = vpop.f32.mrf.mxu0
    %v296 = vadd.f32 %v243, %v295
    %297 = vmatmul.f32.gmra.mxu0 %v266
    %v298 = vpop.f32.mrf.mxu0
    %v299 = vadd.f32 %v248, %v298
    %300 = vmatmul.f32.gmra.mxu0 %v269
    %v301 = vpop.f32.mrf.mxu0
    %v302 = vadd.f32 %v253, %v301
    %303 = vdwg.mxu0
    %304 = vmatpush.msra.mxu0 0.0
    %305 = vmatpush.msra.mxu0 0.0
    %306 = vmatpush.msra.mxu0 0.0
    %307 = vmatpush.msra.mxu0 0.0
    %308 = vmatpush.msra.mxu0 0.0
    %309 = vmatpush.msra.mxu0 0.0
    %310 = vmatpush.msra.mxu0 0.0
    %311 = vmatpush.msra.mxu0 0.0
    %312 = vmatpush.msra.mxu0 0.0
    %313 = vmatpush.msra.mxu0 0.0
    %314 = vmatpush.msra.mxu0 0.0
    %315 = vmatpush.msra.mxu0 0.0
    %316 = vmatpush.msra.mxu0 0.0
    %317 = vmatpush.msra.mxu0 0.0
    %318 = vmatpush.msra.mxu0 0.0
    %319 = vmatpush.msra.mxu0 %v273
    %320 = vmatmul.f32.gmra.mxu0 %v260
    %v321 = vpop.f32.mrf.mxu0
    %v322 = vadd.f32 %v238, %v321
    %323 = vmatmul.f32.gmra.mxu0 %v263
    %v324 = vpop.f32.mrf.mxu0
    %v325 = vadd.f32 %v243, %v324
    %326 = vmatmul.f32.gmra.mxu0 %v266
    %v327 = vpop.f32.mrf.mxu0
    %v328 = vadd.f32 %v248, %v327
    %329 = vmatmul.f32.gmra.mxu0 %v269
    %v330 = vpop.f32.mrf.mxu0
    %v331 = vadd.f32 %v253, %v330
    %332 = vdwg.mxu0
    %v333 = vmax.f32 %v293, 0.0
    %v334 = vmax.f32 %v322, 0.0
    %v335 = vmax.f32 %v296, 0.0
    %v336 = vmax.f32 %v325, 0.0
    %v337 = vmax.f32 %v299, 0.0
    %v338 = vmax.f32 %v328, 0.0
    %v339 = vmax.f32 %v302, 0.0
    %v340 = vmax.f32 %v331, 0.0
    %v341 = vld [vmem:[%s6] sm:$0x3]
    %v343 = vperm.slane %v341, 0
    %v344 = vperm.slane %v341, 1
    %v347 = vmul.f32 %v333, %v343
    %v348 = vmul.f32 %v334, %v344
    %v349 = vmul.f32 %v335, %v343
    %v350 = vmul.f32 %v336, %v344
    %v351 = vmul.f32 %v337, %v343
    %v352 = vmul.f32 %v338, %v344
    %v353 = vmul.f32 %v339, %v343
    %v354 = vmul.f32 %v340, %v344
    %v355 = vadd.f32 %v347, %v348
    %356 = vadd.xlane.f32.xlu0 %v355
    %v357 = vpop.xlane.xlu0 %356
    %v358 = vadd.f32 %v349, %v350
    %359 = vadd.xlane.f32.xlu0 %v358
    %v360 = vpop.xlane.xlu0 %359
    %v361 = vadd.f32 %v351, %v352
    %362 = vadd.xlane.f32.xlu0 %v361
    %v363 = vpop.xlane.xlu0 %362
    %v364 = vadd.f32 %v353, %v354
    %365 = vadd.xlane.f32.xlu0 %v364
    %v366 = vpop.xlane.xlu0 %365
    %v367 = vld [vmem:[%s7] sm:$0xff]
    %v368 = vld [vmem:[%s7 + $0x8] sm:$0xff]
    %v369 = vld [vmem:[%s7 + $0x10] sm:$0xff]
    %v370 = vld [vmem:[%s7 + $0x18] sm:$0xff]
    %v371 = vmul.f32 %v357, %v367
    %v372 = vmul.f32 %v360, %v368
    %v373 = vmul.f32 %v363, %v369
    %v374 = vmul.f32 %v366, %v370
    %vm375 = vcmask 7168
    %v376 = vsel %vm375, %v371, 0.0
    %v377 = vsel %vm375, %v372, 0.0
    %v378 = vadd.f32 %v376, %v377
    %v379 = vsel %vm375, %v373, 0.0
    %v380 = vadd.f32 %v378, %v379
    %v381 = vsel %vm375, %v374, 0.0
    %v382 = vadd.f32 %v380, %v381
    %383 = vadd.xlane.f32.xlu0 %v382
    %v384 = vpop.xlane.xlu0 %383
    %v385 = vrot.slane %v384, 4
    %v386 = vadd.f32 %v384, %v385
    %v387 = vrot.slane %v386, 2
    %v388 = vadd.f32 %v386, %v387
    %v389 = vrot.slane %v388, 1
    %v390 = vadd.f32 %v388, %v389
    %s391 = vtos %v390
    %v392 = vstv %s391
    %s393 = sld [smem:[#allocation2]]
    %v394 = vstv %s393
    %v395 = vadd.f32 %v392, %v394
    %vm396 = vcmask 0
    %397 = vst.msk [vmem:[#allocation3] sm:$0x1] %vm396, %v395
    // Predicated region
    $region38: #{_forward_impl.1} parent=1 // pred_check
      _
    $region39: #{_forward_impl.1} parent=1 // pred_check_branch
      %399 = sbr.rel (0) target = $region41
    $region40: #{_forward_impl.1} parent=1 // pred_region
      %401 = vsyncadd [#allocation4], 0
      %s403 = sshll.u32 [#allocation3], 4
      %s404 = int_to_ptr.vmem [resolvable:$true] %s403
      %s405 = sshll.u32 %s9, 4
      %s406 = int_to_ptr.hbm [resolvable:$true] %s405
      %408 = dma.vmem_to_hbm [thread:$0]  %s404, 16, %s406, [#allocation4]
    $region41: #{_forward_impl.1} parent=1 // pred_fallthru
      _
    // Predicated region
    $region42: #{_forward_impl.1} parent=1 // pred_check
      _
    $region43: #{_forward_impl.1} parent=1 // pred_check_branch
      %410 = sbr.rel (0) target = $region45
    $region44: #{_forward_impl.1} parent=1 // pred_region
      %412 = dma.done [#allocation4], 16
    $region45: #{_forward_impl.1} parent=1 // pred_fallthru
      _
    %413 = vsyncpa [#allocation4], 1

</llo_original>
